<compile_context>
chip_gen: v5e
topology: v5e:2x2
jax: 0.10.0
libtpu: 0.0.40
codegen_flags: <defaults>
</compile_context>

<pallas_src>
import functools

import jax
import jax.numpy as jnp
from jax.experimental import pallas as pl
from jax.experimental.pallas import tpu as pltpu


def _round_up(x, m):
    return ((x + m - 1) // m) * m


def _average_mil_kernel(x_ref, w_ref, b_ref, o_ref, *, n_real, tn, need_mask):
    # x_ref: (TB, TN, D_in) bf16   w_ref: (D_in, Dp) bf16   b_ref: (1, Dp) f32
    # o_ref: (TB, Dp) f32  -- resident across the instance ("arbitrary") grid axis.
    n = pl.program_id(1)

    @pl.when(n == 0)
    def _():
        o_ref[...] = jnp.zeros_like(o_ref)

    TB, TN, D_in = x_ref.shape
    Dp = w_ref.shape[1]

    # Merge leading dims (TN is a multiple of the bf16 sublane tile -> layout-free).
    x2 = x_ref[...].reshape(TB * TN, D_in)
    y = jnp.dot(x2, w_ref[...], preferred_element_type=jnp.float32)
    y = y + b_ref[...]                                   # f32 bias, broadcast over rows

    # Per-instance L2 normalize: rsqrt (EUP slot) + multiply. Padded output lanes are
    # exact zeros so they do not perturb the norm.
    inv = jax.lax.rsqrt(jnp.sum(y * y, axis=-1, keepdims=True))
    y = y * inv

    if need_mask:  # static (trace-time) branch: only when N was zero-padded up to TN
        row = jax.lax.broadcasted_iota(jnp.int32, (TB * TN, 1), 0)
        inst = n * tn + (row % tn)                       # global instance index
        y = jnp.where(inst < n_real, y, 0.0)             # padded rows are b/||b||, drop them

    # Partial sum over this instance chunk, accumulated into the resident output block.
    o_ref[...] += jnp.sum(y.reshape(TB, TN, Dp), axis=1)

    @pl.when(n == pl.num_programs(1) - 1)
    def _():
        o_ref[...] = o_ref[...] * (1.0 / n_real)         # mean over the real instances


def _pick_tiles(B, N, D_in, Dp, vmem_target=12 << 20):
    """Pick (TB, TN): TB multiple of 8, TN multiple of 16 (bf16 sublane tile)."""
    d_lane = _round_up(D_in, 128)                        # VMEM lane padding of the x block
    # Instance tile: whole (16-aligned) bag unless one bag chunk alone would be huge.
    TN = _round_up(N, 16)
    max_tn = max(16, ((4 << 20) // (d_lane * 2)) // 16 * 16)
    TN = min(TN, max_tn)
    # Batch tile: fill ~vmem_target with double-buffered bf16 x + f32 intermediates.
    per_row = (2 * TN * d_lane * 2        # x block (bf16), double buffered, lane padded
               + 2 * TN * Dp * 4          # y + one f32 temporary
               + 4 * Dp * 4)              # output row + headroom
    TB = (vmem_target // per_row) // 8 * 8
    TB = int(max(8, min(1024, TB)))
    # Keep >= 2 batch grid steps (feeds both v7x TensorCores / hides pipeline fill).
    B8 = _round_up(B, 8)
    while TB > 8 and -(-B8 // TB) < 2:
        TB = max(8, (TB // 2) // 8 * 8)
    return TB, TN


def _vmem_budget(tb, tn, D_in, Dp):
    d_lane = _round_up(D_in, 128)
    x_blk = tb * tn * d_lane * 2                         # bf16, lane padded
    w_blk = _round_up(D_in, 8) * Dp * 2
    b_blk = 8 * Dp * 4
    o_blk = tb * Dp * 4
    y_tmp = tb * tn * Dp * 4
    need = 2 * x_blk + 2 * w_blk + 2 * b_blk + 2 * o_blk + 3 * y_tmp
    # Never below the default scoped limit; never above v7x physical VMEM.
    return int(min(64 << 20, max(32 << 20, int(need * 1.5) + (2 << 20))))


def average_mil(x, w, b, *, tb=None, tn=None, interpret=False):
    """x: (B, N, D_in) f32, w: (D_in, D_out) f32, b: (D_out,) f32 -> (B, D_out) f32."""
    B, N, D_in = x.shape
    D_out = w.shape[1]
    Dp = _round_up(D_out, 128)                           # lane-dense output slab

    auto_tb, auto_tn = _pick_tiles(B, N, D_in, Dp)
    tb = auto_tb if tb is None else tb
    tn = auto_tn if tn is None else tn
    assert tb % 8 == 0 and tn % 16 == 0

    Bp = _round_up(B, tb)                                # padded bags: sliced off afterwards
    Np = _round_up(N, tn)                                # padded instances: masked in-kernel

    # Host-side prep: bf16 x / W for the matmul stream; zero pad batch / instances / features.
    x_b = x.astype(jnp.bfloat16)
    if (Bp, Np) != (B, N):
        x_b = jnp.zeros((Bp, Np, D_in), jnp.bfloat16).at[:B, :N, :].set(x_b)

    if Dp != D_out:
        w_p = jnp.zeros((D_in, Dp), jnp.float32).at[:, :D_out].set(w)
        b_p = jnp.zeros((1, Dp), jnp.float32).at[:, :D_out].set(b.reshape(1, D_out))
    else:
        w_p = w
        b_p = b.reshape(1, Dp).astype(jnp.float32)
    w_p = w_p.astype(jnp.bfloat16)

    kernel = functools.partial(
        _average_mil_kernel, n_real=N, tn=tn, need_mask=(Np != N))

    out = pl.pallas_call(
        kernel,
        out_shape=jax.ShapeDtypeStruct((Bp, Dp), jnp.float32),
        grid_spec=pltpu.PrefetchScalarGridSpec(
            num_scalar_prefetch=0,
            grid=(Bp // tb, Np // tn),                   # instance reduction axis last
            in_specs=[
                pl.BlockSpec((tb, tn, D_in), lambda i, n: (i, n, 0)),
                pl.BlockSpec((D_in, Dp), lambda i, n: (0, 0)),
                pl.BlockSpec((1, Dp), lambda i, n: (0, 0)),
            ],
            out_specs=pl.BlockSpec((tb, Dp), lambda i, n: (i, 0)),
        ),
        compiler_params=pltpu.CompilerParams(
            dimension_semantics=("parallel", "arbitrary"),
            vmem_limit_bytes=_vmem_budget(tb, tn, D_in, Dp),
        ),
        interpret=interpret,
    )(x_b, w_p, b_p)

    if Bp != B or Dp != D_out:                           # skip the copy when already aligned
        out = out[:B, :D_out]
    return out


def average_mil_reference(x, w, b):
    y = jnp.einsum("bnd,de->bne", x.astype(jnp.float32), w.astype(jnp.float32),
                   preferred_element_type=jnp.float32) + b
    y = y / jnp.linalg.norm(y, axis=-1, keepdims=True)
    return jnp.mean(y, axis=1)


def _quantized_ref(x, w, b):
    # Reference on the same bf16-quantized inputs the kernel streams (f32 math).
    return average_mil_reference(x.astype(jnp.bfloat16).astype(jnp.float32),
                                 w.astype(jnp.bfloat16).astype(jnp.float32), b)


if __name__ == "__main__":
    key = jax.random.PRNGKey(0)
    kx, kw, kb = jax.random.split(key, 3)

    # Small, aligned shapes: TB=8 -> 2 batch grid steps, one instance step.
    B, N, D_in, D_out = 16, 16, 64, 32
    x = jax.random.normal(kx, (B, N, D_in), dtype=jnp.float32)
    # Deterministic synthetic "Linear" parameters (InnerNetwork is abstract in the source).
    w = jax.random.normal(kw, (D_in, D_out), dtype=jnp.float32) * (1.0 / jnp.sqrt(D_in))
    b = jax.random.normal(kb, (D_out,), dtype=jnp.float32) * 0.1

    out = jax.block_until_ready(average_mil(x, w, b))
    assert out.shape == (B, D_out)
    assert jnp.allclose(out, _quantized_ref(x, w, b), rtol=2e-3, atol=1e-4), \
        "mismatch vs bf16-input reference"
    assert jnp.allclose(out, average_mil_reference(x, w, b), rtol=5e-2, atol=5e-3), \
        "mismatch vs f32 reference"

    # Unaligned shapes: exercises batch zero-padding + in-kernel instance masking.
    B2, N2 = 12, 12
    x2 = jax.random.normal(kx, (B2, N2, D_in), dtype=jnp.float32)
    out2 = jax.block_until_ready(average_mil(x2, w, b))
    assert out2.shape == (B2, D_out)
    assert jnp.allclose(out2, _quantized_ref(x2, w, b), rtol=2e-3, atol=1e-4), \
        "mismatch vs reference (padded/masked path)"

    # Multi-step instance reduction axis: exercises the resident-output accumulator path.
    N3 = 32
    x3 = jax.random.normal(kw, (B, N3, D_in), dtype=jnp.float32)
    out3 = jax.block_until_ready(average_mil(x3, w, b, tn=16))
    assert out3.shape == (B, D_out)
    assert jnp.allclose(out3, _quantized_ref(x3, w, b), rtol=2e-3, atol=1e-4), \
        "mismatch vs reference (N-tiled path)"

    print("KERNEL_OK")
</pallas_src>

<mosaic_0001>
module attributes {stable_mosaic.version = 11 : i64} {
  func.func @_average_mil_kernel(%arg0: i32, %arg1: i32, %arg2: memref<8x16x64xbf16, #tpu.memory_space<vmem>>, %arg3: memref<64x128xbf16, #tpu.memory_space<vmem>>, %arg4: memref<1x128xf32, #tpu.memory_space<vmem>>, %arg5: memref<8x128xf32, #tpu.memory_space<vmem>>) attributes {dimension_semantics = [#tpu.dimension_semantics<parallel>, #tpu.dimension_semantics<arbitrary>], iteration_bounds = array<i64: 2, 1>, scalar_prefetch = 0 : i64, scratch_operands = 0 : i64, tpu.core_type = #tpu.core_type<tc>, window_params = [{transform_indices = @transform_0, window_bounds = array<i64: 8, 16, 64>}, {pipeline_mode = #tpu.pipeline_mode<synchronous>, transform_indices = @transform_1, window_bounds = array<i64: 64, 128>}, {pipeline_mode = #tpu.pipeline_mode<synchronous>, transform_indices = @transform_2, window_bounds = array<i64: 1, 128>}, {transform_indices = @transform_3, window_bounds = array<i64: 8, 128>}]} {
    %c0_i32 = arith.constant 0 : i32
    %0 = arith.cmpi eq, %arg1, %c0_i32 : i32
    %1 = arith.extui %0 : i1 to i32
    %c0_i32_0 = arith.constant 0 : i32
    %2 = arith.cmpi ne, %1, %c0_i32_0 : i32
    scf.if %2 {
      %cst_15 = arith.constant 0.000000e+00 : f32
      %24 = vector.broadcast %cst_15 : f32 to vector<8x128xf32>
      %c0_16 = arith.constant 0 : index
      %c0_17 = arith.constant 0 : index
      %25 = vector.load %arg5[%c0_16, %c0_17] : memref<8x128xf32, #tpu.memory_space<vmem>>, vector<8x128xf32>
      tpu.vector_store %arg5[%c0_16, %c0_17], %24 {strides = array<i32>} : memref<8x128xf32, #tpu.memory_space<vmem>>, vector<8x128xf32>,
    } else {
    }
    %c0 = arith.constant 0 : index
    %c0_1 = arith.constant 0 : index
    %c0_2 = arith.constant 0 : index
    %3 = vector.load %arg2[%c0, %c0_1, %c0_2] : memref<8x16x64xbf16, #tpu.memory_space<vmem>>, vector<8x16x64xbf16>
    %4 = vector.shape_cast %3 : vector<8x16x64xbf16> to vector<128x64xbf16>
    %c0_3 = arith.constant 0 : index
    %c0_4 = arith.constant 0 : index
    %5 = vector.load %arg3[%c0_3, %c0_4] : memref<64x128xbf16, #tpu.memory_space<vmem>>, vector<64x128xbf16>
    %cst = arith.constant dense<0.000000e+00> : vector<128x128xf32>
    %6 = tpu.matmul %4, %5, %cst {dimension_numbers = #tpu.dot_dimension_numbers<[1], [0], [0], [1], [0, 0, 1, 1], [], []>} : vector<128x64xbf16>, vector<64x128xbf16>, vector<128x128xf32> -> vector<128x128xf32>
    %c0_5 = arith.constant 0 : index
    %c0_6 = arith.constant 0 : index
    %7 = vector.load %arg4[%c0_5, %c0_6] : memref<1x128xf32, #tpu.memory_space<vmem>>, vector<1x128xf32>
    %8 = vector.broadcast %7 : vector<1x128xf32> to vector<128x128xf32>
    %9 = arith.addf %6, %8 : vector<128x128xf32>
    %10 = arith.mulf %9, %9 : vector<128x128xf32>
    %cst_7 = arith.constant dense<0.000000e+00> : vector<128xf32>
    %11 = vector.multi_reduction <add>, %10, %cst_7 [1] : vector<128x128xf32> to vector<128xf32>
    %12 = vector.shape_cast %11 : vector<128xf32> to vector<128x1xf32>
    %13 = math.rsqrt %12 : vector<128x1xf32>
    %14 = vector.broadcast %13 : vector<128x1xf32> to vector<128x128xf32>
    %15 = arith.mulf %9, %14 : vector<128x128xf32>
    %c0_8 = arith.constant 0 : index
    %c0_9 = arith.constant 0 : index
    %16 = vector.load %arg5[%c0_8, %c0_9] : memref<8x128xf32, #tpu.memory_space<vmem>>, vector<8x128xf32>
    %17 = vector.shape_cast %15 : vector<128x128xf32> to vector<8x16x128xf32>
    %cst_10 = arith.constant dense<0.000000e+00> : vector<8x128xf32>
    %18 = vector.multi_reduction <add>, %17, %cst_10 [1] : vector<8x16x128xf32> to vector<8x128xf32>
    %19 = arith.addf %16, %18 : vector<8x128xf32>
    %c0_11 = arith.constant 0 : index
    %c0_12 = arith.constant 0 : index
    %20 = vector.load %arg5[%c0_11, %c0_12] : memref<8x128xf32, #tpu.memory_space<vmem>>, vector<8x128xf32>
    tpu.vector_store %arg5[%c0_11, %c0_12], %19 {strides = array<i32>} : memref<8x128xf32, #tpu.memory_space<vmem>>, vector<8x128xf32>,
    %c0_i32_13 = arith.constant 0 : i32
    %21 = arith.cmpi eq, %arg1, %c0_i32_13 : i32
    %22 = arith.extui %21 : i1 to i32
    %c0_i32_14 = arith.constant 0 : i32
    %23 = arith.cmpi ne, %22, %c0_i32_14 : i32
    scf.if %23 {
      %c0_15 = arith.constant 0 : index
      %c0_16 = arith.constant 0 : index
      %24 = vector.load %arg5[%c0_15, %c0_16] : memref<8x128xf32, #tpu.memory_space<vmem>>, vector<8x128xf32>
      %cst_17 = arith.constant 6.250000e-02 : f32
      %25 = vector.broadcast %cst_17 : f32 to vector<8x128xf32>
      %26 = arith.mulf %24, %25 : vector<8x128xf32>
      %c0_18 = arith.constant 0 : index
      %c0_19 = arith.constant 0 : index
      %27 = vector.load %arg5[%c0_18, %c0_19] : memref<8x128xf32, #tpu.memory_space<vmem>>, vector<8x128xf32>
      tpu.vector_store %arg5[%c0_18, %c0_19], %26 {strides = array<i32>} : memref<8x128xf32, #tpu.memory_space<vmem>>, vector<8x128xf32>,
    } else {
    }
    return
  }
  func.func @transform_0(%arg0: i32, %arg1: i32) -> (i32, i32, i32) {
    %c0_i32 = arith.constant 0 : i32
    %c0_i32_0 = arith.constant 0 : i32
    return %arg0, %arg1, %c0_i32 : i32, i32, i32
  }
  func.func @transform_1(%arg0: i32, %arg1: i32) -> (i32, i32) {
    %c0_i32 = arith.constant 0 : i32
    %c0_i32_0 = arith.constant 0 : i32
    %c0_i32_1 = arith.constant 0 : i32
    return %c0_i32, %c0_i32_0 : i32, i32
  }
  func.func @transform_2(%arg0: i32, %arg1: i32) -> (i32, i32) {
    %c0_i32 = arith.constant 0 : i32
    %c0_i32_0 = arith.constant 0 : i32
    %c0_i32_1 = arith.constant 0 : i32
    return %c0_i32, %c0_i32_0 : i32, i32
  }
  func.func @transform_3(%arg0: i32, %arg1: i32) -> (i32, i32) {
    %c0_i32 = arith.constant 0 : i32
    %c0_i32_0 = arith.constant 0 : i32
    return %arg0, %c0_i32 : i32, i32
  }
}

</mosaic_0001>

<llo_original>
// kernel: tpu_custom_call.1
$region0: #{tpu_custom_call.1}
  #allocation0 [shape = 'u32[]', space=smem, size = 0x4, offset = 0x4, fixed_abs, tag = 'smem constant byte address 0x4 - core index']
  #allocation1 [shape = 'u32[72,128]{1,0:T(1,128)}', space=vmem, size = 0x9000, scoped, tag = 'internal scratch']
  %s0 = inlined_call_operand.hbm [shape: bf16[16,16,64], index: 0, kind: input, shape index: {}]
  %s1 = inlined_call_operand.hbm [shape: bf16[64,128], index: 1, kind: input, shape index: {}]
  %s2 = inlined_call_operand.vmem [shape: f32[1,128], index: 2, kind: input, shape index: {}]
  %s3 = inlined_call_operand.hbm [shape: f32[16,128], index: 3, kind: output, shape index: {}]
  %s4 = sld [smem:[#allocation0]]
  $region61: #{tpu_custom_call.1} parent=0
    _
  %s6 = ssub.s32 1, %s4
  %s7 = scalar_select 0, %s6, %s4
  $region1: #{tpu_custom_call.1} parent=0
    #allocation2 [shape = 'u8[65536]{0}', space=vmem, size = 0x10000, scoped, tag = 'input window, operand 0']
    #allocation3 [shape = 's32[2]{0}', space=sflag, size = 0x8, scoped, tag = 'scoped memory for tpu_custom_call.1']
    #allocation4 [shape = 's32[2]{0}', space=sflag, size = 0x8, scoped, tag = 'scoped memory for tpu_custom_call.1']
    #allocation5 [shape = 'u8[16384]{0}', space=vmem, size = 0x4000, scoped, tag = 'input window, operand 1, single buffered']
    #allocation6 [shape = 's32[1]{0}', space=sflag, size = 0x4, scoped, tag = 'scoped memory for tpu_custom_call.1']
    #allocation7 [shape = 'u8[8192]{0}', space=vmem, size = 0x2000, scoped, tag = 'output window, operand 0']
    %8 = vsyncpa [#allocation3], 0
    %s9 = scalar_lea.sflag [#allocation3], 1
    %10 = vsyncpa %s9, 0
    %11 = vsyncpa [#allocation6], 0
    %12 = vsyncpa [#allocation4], 0
    %s13 = scalar_lea.sflag [#allocation4], 1
    %14 = vsyncpa %s13, 0
    loop: start=0, step=1, limit=4
    $region2: #{tpu_custom_call.1} parent=1 // loop_pre_header
      _
    $region3: #{tpu_custom_call.1} parent=1 // loop_header
      %s16 = sphi 0, %s20
      %p17 = scmp.ge.s32.totalorder %s16, 4
      %s23 = sphi 0, %s35
      %s24 = sphi 0, %s31
      %s25 = sphi 0, %s23
      %s26 = sphi 0, %s24
      %s27 = sphi 0, %s25
      %s28 = sphi 0, %s26
      %s40 = sphi 0, %s42
      %s43 = sphi 0, %s40
      %s44 = sphi 0, %s43
      %s60 = sphi 0, %s44
      %s64 = sphi 0, %s64
      %s66 = sphi 0, %s64
      %s67 = sphi 0, %s66
      %s81 = sphi 0, %s67
      %s85 = sphi 0, %s85
      %s87 = sphi 0, %s85
      %s88 = sphi 0, %s87
      %s102 = sphi 0, %s88
      %s108 = sphi 0, %s110
      %s111 = sphi 0, %s108
      %s112 = sphi 0, %s111
      %s128 = sphi 0, %s112
    $region4: #{tpu_custom_call.1} parent=1 // loop_header_branch
      %19 = sbr.rel (%p17) target = $region8
    $region5: #{tpu_custom_call.1} parent=1 // loop_body
      %s21 = ssub.s32 %s16, 1
      %s22 = ssub.s32 %s16, 2
      %s29 = sadd.s32 1, %s24
      %p30 = scmp.ge.s32.totalorder %s29, 1
      %s31 = scalar_select %p30, 0, %s29
      %s32 = sadd.s32 1, %s23
      %s33 = scalar_select %p30, %s32, %s23
      %p34 = scmp.ge.s32.totalorder %s33, 2
      %s35 = scalar_select %p34, 0, %s33
      %s36 = ssub.s32 %s23, %s35
      %s37 = ssub.s32 %s24, %s31
      %s38 = sor.u32 %s36, %s37
      %p39 = scmp.eq.s32.totalorder %s38, 0
      %s41 = sadd.s32 %s40, 1
      %s42 = scalar_select %p39, %s40, %s41
      %p45 = pneg %p39
      %p46 = scmp.eq.s32.totalorder %s16, 1
      %p47 = por %p45, %p46
      %p48 = scmp.ne.s32.totalorder %s40, %s43
      %p49 = scmp.eq.s32.totalorder %s16, 0
      %p50 = por %p48, %p49
      %p51 = scmp.ne.s32.totalorder %s40, %s43
      %p52 = scmp.eq.s32.totalorder %s21, 1
      %p53 = por %p51, %p52
      %p54 = scmp.ne.s32.totalorder %s43, %s44
      %p55 = scmp.eq.s32.totalorder %s21, 0
      %p56 = por %p54, %p55
      %p57 = scmp.ne.s32.totalorder %s43, %s44
      %p58 = scmp.eq.s32.totalorder %s22, 1
      %p59 = por %p57, %p58
      %p61 = scmp.ne.s32.totalorder %s44, %s60
      %p62 = scmp.eq.s32.totalorder %s22, 0
      %p63 = por %p61, %p62
      %s65 = sadd.s32 %s64, 1
      %p68 = scmp.eq.s32.totalorder %s16, 1
      %p69 = scmp.ne.s32.totalorder %s64, %s66
      %p70 = scmp.eq.s32.totalorder %s16, 0
      %p71 = por %p69, %p70
      %p72 = scmp.ne.s32.totalorder %s64, %s66
      %p73 = scmp.eq.s32.totalorder %s21, 1
      %p74 = por %p72, %p73
      %p75 = scmp.ne.s32.totalorder %s66, %s67
      %p76 = scmp.eq.s32.totalorder %s21, 0
      %p77 = por %p75, %p76
      %p78 = scmp.ne.s32.totalorder %s66, %s67
      %p79 = scmp.eq.s32.totalorder %s22, 1
      %p80 = por %p78, %p79
      %p82 = scmp.ne.s32.totalorder %s67, %s81
      %p83 = scmp.eq.s32.totalorder %s22, 0
      %p84 = por %p82, %p83
      %s86 = sadd.s32 %s85, 1
      %p89 = scmp.eq.s32.totalorder %s16, 1
      %p90 = scmp.ne.s32.totalorder %s85, %s87
      %p91 = scmp.eq.s32.totalorder %s16, 0
      %p92 = por %p90, %p91
      %p93 = scmp.ne.s32.totalorder %s85, %s87
      %p94 = scmp.eq.s32.totalorder %s21, 1
      %p95 = por %p93, %p94
      %p96 = scmp.ne.s32.totalorder %s87, %s88
      %p97 = scmp.eq.s32.totalorder %s21, 0
      %p98 = por %p96, %p97
      %p99 = scmp.ne.s32.totalorder %s87, %s88
      %p100 = scmp.eq.s32.totalorder %s22, 1
      %p101 = por %p99, %p100
      %p103 = scmp.ne.s32.totalorder %s88, %s102
      %p104 = scmp.eq.s32.totalorder %s22, 0
      %p105 = por %p103, %p104
      %s106 = ssub.s32 %s23, %s35
      %p107 = scmp.eq.s32.totalorder %s106, 0
      %s109 = sadd.s32 %s108, 1
      %s110 = scalar_select %p107, %s108, %s109
      %p113 = pneg %p107
      %p114 = scmp.eq.s32.totalorder %s16, 1
      %p115 = por %p113, %p114
      %p116 = scmp.ne.s32.totalorder %s108, %s111
      %p117 = scmp.eq.s32.totalorder %s16, 0
      %p118 = por %p116, %p117
      %p119 = scmp.ne.s32.totalorder %s108, %s111
      %p120 = scmp.eq.s32.totalorder %s21, 1
      %p121 = por %p119, %p120
      %p122 = scmp.ne.s32.totalorder %s111, %s112
      %p123 = scmp.eq.s32.totalorder %s21, 0
      %p124 = por %p122, %p123
      %p125 = scmp.ne.s32.totalorder %s111, %s112
      %p126 = scmp.eq.s32.totalorder %s22, 1
      %p127 = por %p125, %p126
      %p129 = scmp.ne.s32.totalorder %s112, %s128
      %p130 = scmp.eq.s32.totalorder %s22, 0
      %p131 = por %p129, %p130
      %p132 = scmp.le.s32.totalorder 1, %s16
      %p133 = scmp.lt.s32.totalorder %s16, 3
      %p134 = pnand %p132, %p133
      %p135 = pneg %p134
      // Predicated region
      $region9: #{tpu_custom_call.1} parent=5 // pred_check
        _
      $region10: #{tpu_custom_call.1} parent=5 // pred_check_branch
        %137 = sbr.rel (%p134) target = $region12
      $region11: #{tpu_custom_call.1} parent=5 // pred_region
        %s138 = ssub.s32 %s16, 1
        // Predicated region
        $region13: #{tpu_custom_call.1} parent=11 // pred_check
          %p139 = pneg %p77
        $region14: #{tpu_custom_call.1} parent=11 // pred_check_branch
          %141 = sbr.rel (%p139) target = $region16
        $region15: #{tpu_custom_call.1} parent=11 // pred_region
          %143 = vsyncadd [#allocation6], 0
          %s144 = sshll.u32 %s1, 4
          %s145 = int_to_ptr.hbm [resolvable:$true] %s144
          %s146 = sshll.u32 [#allocation5], 4
          %s147 = int_to_ptr.vmem [resolvable:$true] %s146
          %152 = dma.hbm_to_vmem [thread:$0]  %s145, 512, %s147, [#allocation6], 64, 64, 4
        $region16: #{tpu_custom_call.1} parent=11 // pred_fallthru
          _
        // Predicated region
        $region17: #{tpu_custom_call.1} parent=11 // pred_check
          %p153 = pneg %p98
        $region18: #{tpu_custom_call.1} parent=11 // pred_check_branch
          %155 = sbr.rel (%p153) target = $region20
        $region19: #{tpu_custom_call.1} parent=11 // pred_region
          _
        $region20: #{tpu_custom_call.1} parent=11 // pred_fallthru
          _
      $region12: #{tpu_custom_call.1} parent=5 // pred_fallthru
        _
      %p156 = scmp.lt.s32.totalorder %s16, 2
      // Predicated region
      $region21: #{tpu_custom_call.1} parent=5 // pred_check
        %p157 = pneg %p156
      $region22: #{tpu_custom_call.1} parent=5 // pred_check_branch
        %159 = sbr.rel (%p157) target = $region24
      $region23: #{tpu_custom_call.1} parent=5 // pred_region
        // Predicated region
        $region25: #{tpu_custom_call.1} parent=23 // pred_check
          %p160 = pneg %p50
        $region26: #{tpu_custom_call.1} parent=23 // pred_check_branch
          %162 = sbr.rel (%p160) target = $region28
        $region27: #{tpu_custom_call.1} parent=23 // pred_region
          %s163 = sand.u32 %s40, 1
          %s164 = scalar_lea.sflag [#allocation3], %s163
          %s165 = sand.u32 %s40, 1
          %s166 = smul.addr %s165, 64
          %s167 = scalar_lea.vmem [#allocation2], %s166
          %s168 = smul.u32 8, %s23
          %s169 = smul.u32 2, %s24
          %171 = vsyncadd %s164, 0
          %s172 = smul.addr %s168, 2
          %s173 = sadd.s32 %s169, %s172
          %s174 = smul.addr %s173, 4
          %s175 = scalar_lea.hbm %s0, %s174
          %s176 = sshll.u32 %s175, 4
          %s177 = int_to_ptr.hbm [resolvable:$true] %s176
          %s178 = sshll.u32 %s167, 4
          %s179 = int_to_ptr.vmem [resolvable:$true] %s178
          %184 = dma.hbm_to_vmem [thread:$0]  %s177, 1024, %s179, %s164, 64, 64, 4
        $region28: #{tpu_custom_call.1} parent=23 // pred_fallthru
          _
      $region24: #{tpu_custom_call.1} parent=5 // pred_fallthru
        _
      %p185 = scmp.le.s32.totalorder 1, %s16
      %p186 = scmp.lt.s32.totalorder %s16, 3
      %p187 = pnand %p185, %p186
      %p188 = pneg %p187
      // Predicated region
      $region29: #{tpu_custom_call.1} parent=5 // pred_check
        _
      $region30: #{tpu_custom_call.1} parent=5 // pred_check_branch
        %190 = sbr.rel (%p187) target = $region32
      $region31: #{tpu_custom_call.1} parent=5 // pred_region
        %s191 = ssub.s32 %s16, 1
        %s192 = sand.u32 %s43, 1
        %s193 = scalar_lea.sflag [#allocation3], %s192
        %s194 = sand.u32 %s43, 1
        %s195 = smul.addr %s194, 64
        %s196 = scalar_lea.vmem [#allocation2], %s195
        // Predicated region
        $region33: #{tpu_custom_call.1} parent=31 // pred_check
          %p197 = pneg %p56
        $region34: #{tpu_custom_call.1} parent=31 // pred_check_branch
          %199 = sbr.rel (%p197) target = $region36
        $region35: #{tpu_custom_call.1} parent=31 // pred_region
          %201 = dma.done %s193, 1024
        $region36: #{tpu_custom_call.1} parent=31 // pred_fallthru
          _
        // Predicated region
        $region37: #{tpu_custom_call.1} parent=31 // pred_check
          %p202 = pneg %p77
        $region38: #{tpu_custom_call.1} parent=31 // pred_check_branch
          %204 = sbr.rel (%p202) target = $region40
        $region39: #{tpu_custom_call.1} parent=31 // pred_region
          %206 = dma.done [#allocation6], 512
        $region40: #{tpu_custom_call.1} parent=31 // pred_fallthru
          _
        %s207 = sand.u32 %s43, 1
        %s208 = scalar_lea.sflag [#allocation3], %s207
        %s209 = sand.u32 %s43, 1
        %s210 = smul.addr %s209, 64
        %s211 = scalar_lea.vmem [#allocation2], %s210
        %p212 = pneg %p56
        %p213 = pneg %p53
        %p214 = pneg %p77
        %p215 = pneg %p74
        %p216 = pneg %p98
        %p217 = pneg %p95
        %p218 = pneg %p124
        %p219 = pneg %p121
        %s220 = sand.u32 %s111, 1
        %s221 = scalar_lea.sflag [#allocation4], %s220
        %s222 = sand.u32 %s111, 1
        %s223 = smul.addr %s222, 8
        %s224 = scalar_lea.vmem [#allocation7], %s223
        %s225 = smul.u32 8, %s25
        %s226 = smul.u32 2, %s26
        %p228 = scmp.eq.s32.totalorder %s26, 0
        // Predicated region
        $region41: #{tpu_custom_call.1} parent=31 // pred_check
          %p229 = pneg %p228
        $region42: #{tpu_custom_call.1} parent=31 // pred_check_branch
          %231 = sbr.rel (%p229) target = $region44
        $region43: #{tpu_custom_call.1} parent=31 // pred_region
          %232 = vst [vmem:[%s224] sm:$0xff] 0.0
        $region44: #{tpu_custom_call.1} parent=31 // pred_fallthru
          _
        %v233 = vld [vmem:[%s196] sm:$0xf]
        %v234 = vld [vmem:[%s196 + $0x4] sm:$0xf]
        %v235 = vld [vmem:[%s196 + $0x8] sm:$0xf]
        %v236 = vld [vmem:[%s196 + $0xc] sm:$0xf]
        %v237 = vld [vmem:[%s196 + $0x10] sm:$0xf]
        %v238 = vld [vmem:[%s196 + $0x14] sm:$0xf]
        %v239 = vld [vmem:[%s196 + $0x18] sm:$0xf]
        %v240 = vld [vmem:[%s196 + $0x1c] sm:$0xf]
        %v241 = vld [vmem:[%s196 + $0x20] sm:$0xf]
        %v242 = vld [vmem:[%s196 + $0x24] sm:$0xf]
        %v243 = vld [vmem:[%s196 + $0x28] sm:$0xf]
        %v244 = vld [vmem:[%s196 + $0x2c] sm:$0xf]
        %v245 = vld [vmem:[%s196 + $0x30] sm:$0xf]
        %v246 = vld [vmem:[%s196 + $0x34] sm:$0xf]
        %v247 = vld [vmem:[%s196 + $0x38] sm:$0xf]
        %v248 = vld [vmem:[%s196 + $0x3c] sm:$0xf]
        %v249 = vld [vmem:[#allocation5] sm:$0xf]
        %v250 = vld [vmem:[#allocation5 + $0x4] sm:$0xf]
        %v251 = vld [vmem:[#allocation5 + $0x8] sm:$0xf]
        %v252 = vld [vmem:[#allocation5 + $0xc] sm:$0xf]
        %v253 = vld [vmem:[#allocation5 + $0x10] sm:$0xf]
        %v254 = vld [vmem:[#allocation5 + $0x14] sm:$0xf]
        %v255 = vld [vmem:[#allocation5 + $0x18] sm:$0xf]
        %v256 = vld [vmem:[#allocation5 + $0x1c] sm:$0xf]
        %v257 = vld [vmem:[%s2] sm:$0x1]
        %v259 = vperm.slane %v257, 0
        %v277 = vunpack.c.l.b16 %v233
        %v278 = vunpack.c.l.b16 %v234
        %v279 = vunpack.c.l.b16 %v235
        %v280 = vunpack.c.l.b16 %v236
        %v281 = vunpack.c.l.b16 %v237
        %v282 = vunpack.c.l.b16 %v238
        %v283 = vunpack.c.l.b16 %v239
        %v284 = vunpack.c.l.b16 %v240
        %v285 = vunpack.c.l.b16 %v241
        %v286 = vunpack.c.l.b16 %v242
        %v287 = vunpack.c.l.b16 %v243
        %v288 = vunpack.c.l.b16 %v244
        %v289 = vunpack.c.l.b16 %v245
        %v290 = vunpack.c.l.b16 %v246
        %v291 = vunpack.c.l.b16 %v247
        %v292 = vunpack.c.l.b16 %v248
        %v293 = vpack.c.b16 %v278, %v277
        %v294 = vpack.c.b16 %v280, %v279
        %v295 = vpack.c.b16 %v282, %v281
        %v296 = vpack.c.b16 %v284, %v283
        %v297 = vpack.c.b16 %v286, %v285
        %v298 = vpack.c.b16 %v288, %v287
        %v299 = vpack.c.b16 %v290, %v289
        %v300 = vpack.c.b16 %v292, %v291
        %v309 = vunpack.c.l.b16 %v249
        %v310 = vunpack.c.l.b16 %v250
        %v311 = vunpack.c.l.b16 %v251
        %v312 = vunpack.c.l.b16 %v252
        %v313 = vunpack.c.l.b16 %v253
        %v314 = vunpack.c.l.b16 %v254
        %v315 = vunpack.c.l.b16 %v255
        %v316 = vunpack.c.l.b16 %v256
        %v317 = vpack.c.b16 %v310, %v309
        %v318 = vpack.c.b16 %v312, %v311
        %v319 = vpack.c.b16 %v314, %v313
        %v320 = vpack.c.b16 %v316, %v315
        %vm325 = vcmask 523264
        %v327 = vsel %vm325, %v293, 0
        %v330 = vsel %vm325, %v294, 0
        %v333 = vsel %vm325, %v295, 0
        %v336 = vsel %vm325, %v296, 0
        %v339 = vsel %vm325, %v297, 0
        %v342 = vsel %vm325, %v298, 0
        %v345 = vsel %vm325, %v299, 0
        %v348 = vsel %vm325, %v300, 0
        %350 = vmatpush.bf16.msra.mxu0 0
        %351 = vmatpush.bf16.msra.mxu0 0
        %352 = vmatpush.bf16.msra.mxu0 0
        %353 = vmatpush.bf16.msra.mxu0 0
        %354 = vmatpush.bf16.msra.mxu0 %v320
        %355 = vmatpush.bf16.msra.mxu0 %v319
        %356 = vmatpush.bf16.msra.mxu0 %v318
        %357 = vmatpush.bf16.msra.mxu0 %v317
        %358 = vmatmul.bf16.gmra.mxu0 %v327
        %v359 = vpop.f32.mrf.mxu0
        %v360 = vadd.f32 %v259, %v359
        %v361 = vpop.f32.mrf.mxu0
        %v362 = vadd.f32 %v259, %v361
        %363 = vmatmul.bf16.gmra.mxu0 %v330
        %v364 = vpop.f32.mrf.mxu0
        %v365 = vadd.f32 %v259, %v364
        %v366 = vpop.f32.mrf.mxu0
        %v367 = vadd.f32 %v259, %v366
        %368 = vmatmul.bf16.gmra.mxu0 %v333
        %v369 = vpop.f32.mrf.mxu0
        %v370 = vadd.f32 %v259, %v369
        %v371 = vpop.f32.mrf.mxu0
        %v372 = vadd.f32 %v259, %v371
        %373 = vmatmul.bf16.gmra.mxu0 %v336
        %v374 = vpop.f32.mrf.mxu0
        %v375 = vadd.f32 %v259, %v374
        %v376 = vpop.f32.mrf.mxu0
        %v377 = vadd.f32 %v259, %v376
        %378 = vmatmul.bf16.gmra.mxu0 %v339
        %v379 = vpop.f32.mrf.mxu0
        %v380 = vadd.f32 %v259, %v379
        %v381 = vpop.f32.mrf.mxu0
        %v382 = vadd.f32 %v259, %v381
        %383 = vmatmul.bf16.gmra.mxu0 %v342
        %v384 = vpop.f32.mrf.mxu0
        %v385 = vadd.f32 %v259, %v384
        %v386 = vpop.f32.mrf.mxu0
        %v387 = vadd.f32 %v259, %v386
        %388 = vmatmul.bf16.gmra.mxu0 %v345
        %v389 = vpop.f32.mrf.mxu0
        %v390 = vadd.f32 %v259, %v389
        %v391 = vpop.f32.mrf.mxu0
        %v392 = vadd.f32 %v259, %v391
        %393 = vmatmul.bf16.gmra.mxu0 %v348
        %v394 = vpop.f32.mrf.mxu0
        %v395 = vadd.f32 %v259, %v394
        %v396 = vpop.f32.mrf.mxu0
        %v397 = vadd.f32 %v259, %v396
        %398 = vdwg.mxu0
        %v399 = vmul.f32 %v360, %v360
        %v400 = vmul.f32 %v362, %v362
        %v401 = vmul.f32 %v365, %v365
        %v402 = vmul.f32 %v367, %v367
        %v403 = vmul.f32 %v370, %v370
        %v404 = vmul.f32 %v372, %v372
        %v405 = vmul.f32 %v375, %v375
        %v406 = vmul.f32 %v377, %v377
        %v407 = vmul.f32 %v380, %v380
        %v408 = vmul.f32 %v382, %v382
        %v409 = vmul.f32 %v385, %v385
        %v410 = vmul.f32 %v387, %v387
        %v411 = vmul.f32 %v390, %v390
        %v412 = vmul.f32 %v392, %v392
        %v413 = vmul.f32 %v395, %v395
        %v414 = vmul.f32 %v397, %v397
        %415 = vadd.xlane.f32.xlu0 %v399
        %v416 = vpop.xlane.xlu0 %415
        %417 = vadd.xlane.f32.xlu0 %v400
        %v418 = vpop.xlane.xlu0 %417
        %419 = vadd.xlane.f32.xlu0 %v401
        %v420 = vpop.xlane.xlu0 %419
        %421 = vadd.xlane.f32.xlu0 %v402
        %v422 = vpop.xlane.xlu0 %421
        %423 = vadd.xlane.f32.xlu0 %v403
        %v424 = vpop.xlane.xlu0 %423
        %425 = vadd.xlane.f32.xlu0 %v404
        %v426 = vpop.xlane.xlu0 %425
        %427 = vadd.xlane.f32.xlu0 %v405
        %v428 = vpop.xlane.xlu0 %427
        %429 = vadd.xlane.f32.xlu0 %v406
        %v430 = vpop.xlane.xlu0 %429
        %431 = vadd.xlane.f32.xlu0 %v407
        %v432 = vpop.xlane.xlu0 %431
        %433 = vadd.xlane.f32.xlu0 %v408
        %v434 = vpop.xlane.xlu0 %433
        %435 = vadd.xlane.f32.xlu0 %v409
        %v436 = vpop.xlane.xlu0 %435
        %437 = vadd.xlane.f32.xlu0 %v410
        %v438 = vpop.xlane.xlu0 %437
        %439 = vadd.xlane.f32.xlu0 %v411
        %v440 = vpop.xlane.xlu0 %439
        %441 = vadd.xlane.f32.xlu0 %v412
        %v442 = vpop.xlane.xlu0 %441
        %443 = vadd.xlane.f32.xlu0 %v413
        %v444 = vpop.xlane.xlu0 %443
        %445 = vadd.xlane.f32.xlu0 %v414
        %v446 = vpop.xlane.xlu0 %445
        %v447 = vrsqrt.pop %v416
        %v448 = vmul.f32 %v447, %v416
        %v449 = vmul.f32 %v448, %v447
        %v450 = vmul.f32 0.5, %v449
        %v451 = vsub.f32 1.5, %v450
        %v452 = vmul.f32 %v447, %v451
        %vm453 = vweird.f32 %v416
        %vm454 = vweird.f32 %v447
        %vm455 = vmor %vm453, %vm454
        %v456 = vsel %vm455, %v447, %v452
        %v457 = vrsqrt.pop %v418
        %v458 = vmul.f32 %v457, %v418
        %v459 = vmul.f32 %v458, %v457
        %v460 = vmul.f32 0.5, %v459
        %v461 = vsub.f32 1.5, %v460
        %v462 = vmul.f32 %v457, %v461
        %vm463 = vweird.f32 %v418
        %vm464 = vweird.f32 %v457
        %vm465 = vmor %vm463, %vm464
        %v466 = vsel %vm465, %v457, %v462
        %v467 = vrsqrt.pop %v420
        %v468 = vmul.f32 %v467, %v420
        %v469 = vmul.f32 %v468, %v467
        %v470 = vmul.f32 0.5, %v469
        %v471 = vsub.f32 1.5, %v470
        %v472 = vmul.f32 %v467, %v471
        %vm473 = vweird.f32 %v420
        %vm474 = vweird.f32 %v467
        %vm475 = vmor %vm473, %vm474
        %v476 = vsel %vm475, %v467, %v472
        %v477 = vrsqrt.pop %v422
        %v478 = vmul.f32 %v477, %v422
        %v479 = vmul.f32 %v478, %v477
        %v480 = vmul.f32 0.5, %v479
        %v481 = vsub.f32 1.5, %v480
        %v482 = vmul.f32 %v477, %v481
        %vm483 = vweird.f32 %v422
        %vm484 = vweird.f32 %v477
        %vm485 = vmor %vm483, %vm484
        %v486 = vsel %vm485, %v477, %v482
        %v487 = vrsqrt.pop %v424
        %v488 = vmul.f32 %v487, %v424
        %v489 = vmul.f32 %v488, %v487
        %v490 = vmul.f32 0.5, %v489
        %v491 = vsub.f32 1.5, %v490
        %v492 = vmul.f32 %v487, %v491
        %vm493 = vweird.f32 %v424
        %vm494 = vweird.f32 %v487
        %vm495 = vmor %vm493, %vm494
        %v496 = vsel %vm495, %v487, %v492
        %v497 = vrsqrt.pop %v426
        %v498 = vmul.f32 %v497, %v426
        %v499 = vmul.f32 %v498, %v497
        %v500 = vmul.f32 0.5, %v499
        %v501 = vsub.f32 1.5, %v500
        %v502 = vmul.f32 %v497, %v501
        %vm503 = vweird.f32 %v426
        %vm504 = vweird.f32 %v497
        %vm505 = vmor %vm503, %vm504
        %v506 = vsel %vm505, %v497, %v502
        %v507 = vrsqrt.pop %v428
        %v508 = vmul.f32 %v507, %v428
        %v509 = vmul.f32 %v508, %v507
        %v510 = vmul.f32 0.5, %v509
        %v511 = vsub.f32 1.5, %v510
        %v512 = vmul.f32 %v507, %v511
        %vm513 = vweird.f32 %v428
        %vm514 = vweird.f32 %v507
        %vm515 = vmor %vm513, %vm514
        %v516 = vsel %vm515, %v507, %v512
        %v517 = vrsqrt.pop %v430
        %v518 = vmul.f32 %v517, %v430
        %v519 = vmul.f32 %v518, %v517
        %v520 = vmul.f32 0.5, %v519
        %v521 = vsub.f32 1.5, %v520
        %v522 = vmul.f32 %v517, %v521
        %vm523 = vweird.f32 %v430
        %vm524 = vweird.f32 %v517
        %vm525 = vmor %vm523, %vm524
        %v526 = vsel %vm525, %v517, %v522
        %v527 = vrsqrt.pop %v432
        %v528 = vmul.f32 %v527, %v432
        %v529 = vmul.f32 %v528, %v527
        %v530 = vmul.f32 0.5, %v529
        %v531 = vsub.f32 1.5, %v530
        %v532 = vmul.f32 %v527, %v531
        %vm533 = vweird.f32 %v432
        %vm534 = vweird.f32 %v527
        %vm535 = vmor %vm533, %vm534
        %v536 = vsel %vm535, %v527, %v532
        %v537 = vrsqrt.pop %v434
        %v538 = vmul.f32 %v537, %v434
        %v539 = vmul.f32 %v538, %v537
        %v540 = vmul.f32 0.5, %v539
        %v541 = vsub.f32 1.5, %v540
        %v542 = vmul.f32 %v537, %v541
        %vm543 = vweird.f32 %v434
        %vm544 = vweird.f32 %v537
        %vm545 = vmor %vm543, %vm544
        %v546 = vsel %vm545, %v537, %v542
        %v547 = vrsqrt.pop %v436
        %v548 = vmul.f32 %v547, %v436
        %v549 = vmul.f32 %v548, %v547
        %v550 = vmul.f32 0.5, %v549
        %v551 = vsub.f32 1.5, %v550
        %v552 = vmul.f32 %v547, %v551
        %vm553 = vweird.f32 %v436
        %vm554 = vweird.f32 %v547
        %vm555 = vmor %vm553, %vm554
        %v556 = vsel %vm555, %v547, %v552
        %v557 = vrsqrt.pop %v438
        %v558 = vmul.f32 %v557, %v438
        %v559 = vmul.f32 %v558, %v557
        %v560 = vmul.f32 0.5, %v559
        %v561 = vsub.f32 1.5, %v560
        %v562 = vmul.f32 %v557, %v561
        %vm563 = vweird.f32 %v438
        %vm564 = vweird.f32 %v557
        %vm565 = vmor %vm563, %vm564
        %v566 = vsel %vm565, %v557, %v562
        %v567 = vrsqrt.pop %v440
        %v568 = vmul.f32 %v567, %v440
        %v569 = vmul.f32 %v568, %v567
        %v570 = vmul.f32 0.5, %v569
        %v571 = vsub.f32 1.5, %v570
        %v572 = vmul.f32 %v567, %v571
        %vm573 = vweird.f32 %v440
        %vm574 = vweird.f32 %v567
        %vm575 = vmor %vm573, %vm574
        %v576 = vsel %vm575, %v567, %v572
        %v577 = vrsqrt.pop %v442
        %v578 = vmul.f32 %v577, %v442
        %v579 = vmul.f32 %v578, %v577
        %v580 = vmul.f32 0.5, %v579
        %v581 = vsub.f32 1.5, %v580
        %v582 = vmul.f32 %v577, %v581
        %vm583 = vweird.f32 %v442
        %vm584 = vweird.f32 %v577
        %vm585 = vmor %vm583, %vm584
        %v586 = vsel %vm585, %v577, %v582
        %v587 = vrsqrt.pop %v444
        %v588 = vmul.f32 %v587, %v444
        %v589 = vmul.f32 %v588, %v587
        %v590 = vmul.f32 0.5, %v589
        %v591 = vsub.f32 1.5, %v590
        %v592 = vmul.f32 %v587, %v591
        %vm593 = vweird.f32 %v444
        %vm594 = vweird.f32 %v587
        %vm595 = vmor %vm593, %vm594
        %v596 = vsel %vm595, %v587, %v592
        %v597 = vrsqrt.pop %v446
        %v598 = vmul.f32 %v597, %v446
        %v599 = vmul.f32 %v598, %v597
        %v600 = vmul.f32 0.5, %v599
        %v601 = vsub.f32 1.5, %v600
        %v602 = vmul.f32 %v597, %v601
        %vm603 = vweird.f32 %v446
        %vm604 = vweird.f32 %v597
        %vm605 = vmor %vm603, %vm604
        %v606 = vsel %vm605, %v597, %v602
        %v607 = vmul.f32 %v360, %v456
        %v608 = vmul.f32 %v362, %v466
        %v609 = vmul.f32 %v365, %v476
        %v610 = vmul.f32 %v367, %v486
        %v611 = vmul.f32 %v370, %v496
        %v612 = vmul.f32 %v372, %v506
        %v613 = vmul.f32 %v375, %v516
        %v614 = vmul.f32 %v377, %v526
        %v615 = vmul.f32 %v380, %v536
        %v616 = vmul.f32 %v382, %v546
        %v617 = vmul.f32 %v385, %v556
        %v618 = vmul.f32 %v387, %v566
        %v619 = vmul.f32 %v390, %v576
        %v620 = vmul.f32 %v392, %v586
        %v621 = vmul.f32 %v395, %v596
        %v622 = vmul.f32 %v397, %v606
        %v623 = vld [vmem:[%s224] sm:$0xff]
        %v624 = vadd.f32 %v607, %v608
        %v625 = vrot.slane %v624, 4
        %v626 = vadd.f32 %v624, %v625
        %v627 = vrot.slane %v626, 2
        %v628 = vadd.f32 %v626, %v627
        %v629 = vrot.slane %v628, 1
        %v630 = vadd.f32 %v628, %v629
        %v631 = vadd.f32 %v609, %v610
        %v632 = vrot.slane %v631, 4
        %v633 = vadd.f32 %v631, %v632
        %v634 = vrot.slane %v633, 2
        %v635 = vadd.f32 %v633, %v634
        %v636 = vrot.slane %v635, 1
        %v637 = vadd.f32 %v635, %v636
        %v638 = vadd.f32 %v611, %v612
        %v639 = vrot.slane %v638, 4
        %v640 = vadd.f32 %v638, %v639
        %v641 = vrot.slane %v640, 2
        %v642 = vadd.f32 %v640, %v641
        %v643 = vrot.slane %v642, 1
        %v644 = vadd.f32 %v642, %v643
        %v645 = vadd.f32 %v613, %v614
        %v646 = vrot.slane %v645, 4
        %v647 = vadd.f32 %v645, %v646
        %v648 = vrot.slane %v647, 2
        %v649 = vadd.f32 %v647, %v648
        %v650 = vrot.slane %v649, 1
        %v651 = vadd.f32 %v649, %v650
        %v652 = vadd.f32 %v615, %v616
        %v653 = vrot.slane %v652, 4
        %v654 = vadd.f32 %v652, %v653
        %v655 = vrot.slane %v654, 2
        %v656 = vadd.f32 %v654, %v655
        %v657 = vrot.slane %v656, 1
        %v658 = vadd.f32 %v656, %v657
        %v659 = vadd.f32 %v617, %v618
        %v660 = vrot.slane %v659, 4
        %v661 = vadd.f32 %v659, %v660
        %v662 = vrot.slane %v661, 2
        %v663 = vadd.f32 %v661, %v662
        %v664 = vrot.slane %v663, 1
        %v665 = vadd.f32 %v663, %v664
        %v666 = vadd.f32 %v619, %v620
        %v667 = vrot.slane %v666, 4
        %v668 = vadd.f32 %v666, %v667
        %v669 = vrot.slane %v668, 2
        %v670 = vadd.f32 %v668, %v669
        %v671 = vrot.slane %v670, 1
        %v672 = vadd.f32 %v670, %v671
        %v673 = vadd.f32 %v621, %v622
        %v674 = vrot.slane %v673, 4
        %v675 = vadd.f32 %v673, %v674
        %v676 = vrot.slane %v675, 2
        %v677 = vadd.f32 %v675, %v676
        %v678 = vrot.slane %v677, 1
        %v679 = vadd.f32 %v677, %v678
        %vm688 = vcmask 1041409
        %v689 = vsel %vm688, %v637, %v630
        %vm690 = vcmask 1042434
        %v691 = vsel %vm690, %v644, %v689
        %vm692 = vcmask 1043459
        %v693 = vsel %vm692, %v651, %v691
        %vm694 = vcmask 1044484
        %v695 = vsel %vm694, %v658, %v693
        %vm696 = vcmask 1045509
        %v697 = vsel %vm696, %v665, %v695
        %vm698 = vcmask 1046534
        %v699 = vsel %vm698, %v672, %v697
        %vm700 = vcmask 1047559
        %v701 = vsel %vm700, %v679, %v699
        %v703 = vadd.f32 %v623, %v701
        %704 = vst [vmem:[%s224] sm:$0xff] %v703
        // Predicated region
        $region45: #{tpu_custom_call.1} parent=31 // pred_check
          %p705 = pneg %p228
        $region46: #{tpu_custom_call.1} parent=31 // pred_check_branch
          %707 = sbr.rel (%p705) target = $region48
        $region47: #{tpu_custom_call.1} parent=31 // pred_region
          %v708 = vld [vmem:[%s224] sm:$0xff]
          %v709 = vmul.f32 %v708, 0.0625
          %710 = vst [vmem:[%s224] sm:$0xff] %v709
        $region48: #{tpu_custom_call.1} parent=31 // pred_fallthru
          _
        %s711 = sand.u32 %s111, 1
        %s712 = scalar_lea.sflag [#allocation4], %s711
        %s713 = sand.u32 %s111, 1
        %s714 = smul.addr %s713, 8
        %s715 = scalar_lea.vmem [#allocation7], %s714
        // Predicated region
        $region49: #{tpu_custom_call.1} parent=31 // pred_check
          %p716 = pneg %p121
        $region50: #{tpu_custom_call.1} parent=31 // pred_check_branch
          %718 = sbr.rel (%p716) target = $region52
        $region51: #{tpu_custom_call.1} parent=31 // pred_region
          %720 = vsyncadd %s712, 0
          %s721 = smul.addr %s25, 8
          %s722 = scalar_lea.hbm %s3, %s721
          %s724 = sshll.u32 %s715, 4
          %s725 = int_to_ptr.vmem [resolvable:$true] %s724
          %s726 = sshll.u32 %s722, 4
          %s727 = int_to_ptr.hbm [resolvable:$true] %s726
          %729 = dma.vmem_to_hbm [thread:$0]  %s725, 128, %s727, %s712
        $region52: #{tpu_custom_call.1} parent=31 // pred_fallthru
          _
      $region32: #{tpu_custom_call.1} parent=5 // pred_fallthru
        _
      %p730 = scmp.le.s32.totalorder 2, %s16
      // Predicated region
      $region53: #{tpu_custom_call.1} parent=5 // pred_check
        %p731 = pneg %p730
      $region54: #{tpu_custom_call.1} parent=5 // pred_check_branch
        %733 = sbr.rel (%p731) target = $region56
      $region55: #{tpu_custom_call.1} parent=5 // pred_region
        %s734 = ssub.s32 %s16, 2
        // Predicated region
        $region57: #{tpu_custom_call.1} parent=55 // pred_check
          %p735 = pneg %p127
        $region58: #{tpu_custom_call.1} parent=55 // pred_check_branch
          %737 = sbr.rel (%p735) target = $region60
        $region59: #{tpu_custom_call.1} parent=55 // pred_region
          %s738 = sand.u32 %s112, 1
          %s739 = scalar_lea.sflag [#allocation4], %s738
          %s740 = sand.u32 %s112, 1
          %s741 = smul.addr %s740, 8
          %s742 = scalar_lea.vmem [#allocation7], %s741
          %744 = dma.done %s739, 128
        $region60: #{tpu_custom_call.1} parent=55 // pred_fallthru
          _
      $region56: #{tpu_custom_call.1} parent=5 // pred_fallthru
        _
    $region6: #{tpu_custom_call.1} parent=1 // loop_footer
      %s20 = sadd.s32 1, %s16
    $region7: #{tpu_custom_call.1} parent=1 // loop_footer_branch
      %15 = sbr.rel target = $region3
    $region8: #{tpu_custom_call.1} parent=1 // loop_exit
      _
    %745 = vsyncpa [#allocation3], 1
    %s746 = scalar_lea.sflag [#allocation3], 1
    %747 = vsyncpa %s746, 1
    %748 = vsyncpa [#allocation6], 1
    %749 = vsyncpa [#allocation4], 1
    %s750 = scalar_lea.sflag [#allocation4], 1
    %751 = vsyncpa %s750, 1

</llo_original>
